<compile_context>
chip_gen: v7x
topology: tpu7x:2x2x1
jax: 0.10.0
libtpu: 0.0.40
codegen_flags: <defaults>
</compile_context>

<pallas_src>
import functools

import jax
import jax.numpy as jnp
from jax.experimental import pallas as pl
from jax.experimental.pallas import tpu as pltpu

H1, H2 = 200, 100        # logical hidden sizes (PyTorch spec)
H1P, H2P = 256, 128      # lane-padded hidden sizes (multiples of 128)
Q_ROWS = 8               # fc3 output is produced as a lane-dense [8, tn] slab
MIN_ROWS_PER_STEP = 256  # only force >=2 grid steps (v7x dual-TC) above this


def _round_up(x, m):
    return ((x + m - 1) // m) * m


def critic_kernel(s_ref, a_ref, w1s_ref, w1a_ref, b1_ref, w2_ref, b2_ref,
                  w3_ref, b3_ref, out_ref):
    # fc1: two MXU matmuls (no host concat), f32 accumulate, bf16 epilogue.
    s = s_ref[...].astype(jnp.bfloat16)                            # [TN, S]
    a = a_ref[...].astype(jnp.bfloat16)                            # [TN, A]
    h1f = (jnp.dot(s, w1s_ref[...], preferred_element_type=jnp.float32)
           + jnp.dot(a, w1a_ref[...], preferred_element_type=jnp.float32))
    h1 = jnp.maximum(h1f.astype(jnp.bfloat16) + b1_ref[...], 0.0)  # [TN,256] bf16

    # fc2: MXU, f32 accumulate, bf16 epilogue.
    h2f = jnp.dot(h1, w2_ref[...], preferred_element_type=jnp.float32)
    h2 = jnp.maximum(h2f.astype(jnp.bfloat16) + b2_ref[...], 0.0)  # [TN,128] bf16

    # fc3 as an NT matmul: [8,128] x [TN,128]^T -> [8,TN] (lane-dense).
    # Row 0 carries Q(s,a); rows 1..7 contract zero weight rows.
    q8 = jax.lax.dot_general(w3_ref[...], h2,
                             (((1,), (1,)), ((), ())),
                             preferred_element_type=jnp.float32)   # [8, TN] f32
    out_ref[0] = q8 + b3_ref[...]


def prepare_params(params, state_dim, action_dim):
    """Split / zero-pad / cast PyTorch-layout params for the kernel.

    params = (w1 [S+A,200], b1 [1,200], w2 [200,100], b2 [1,100],
              w3 [100,1],   b3 [1,1]), all f32.
    Zero padding is exact: padded h1/h2 columns are relu(0)=0 and multiply
    zero weight rows downstream; the 7 extra zero rows of w3 only produce
    discarded output rows.
    """
    w1, b1, w2, b2, w3, b3 = params
    w1p = jnp.pad(w1, ((0, 0), (0, H1P - H1)))
    w1s = w1p[:state_dim].astype(jnp.bfloat16)                     # [S, 256]
    w1a = w1p[state_dim:].astype(jnp.bfloat16)                     # [A, 256]
    b1p = jnp.pad(b1, ((0, 0), (0, H1P - H1))).astype(jnp.bfloat16)
    w2p = jnp.pad(w2, ((0, H1P - H1), (0, H2P - H2))).astype(jnp.bfloat16)
    b2p = jnp.pad(b2, ((0, 0), (0, H2P - H2))).astype(jnp.bfloat16)
    w3r = jnp.pad(w3, ((0, H2P - H2), (0, 0))).T                   # [1, 128]
    w3_8 = jnp.pad(w3r, ((0, Q_ROWS - 1), (0, 0))).astype(jnp.bfloat16)  # [8,128]
    return (w1s, w1a, b1p, w2p, b2p, w3_8, b3.astype(jnp.float32))


def _choose_tile(n, block_n, min_steps):
    """Adaptive batch tile: big tiles, <=7 pad rows/tile, >=min_steps when large."""
    n8 = _round_up(max(int(n), 1), 8)
    steps = pl.cdiv(n8, block_n)
    if min_steps > 1 and n8 >= min_steps * MIN_ROWS_PER_STEP:
        steps = max(steps, min_steps)        # keep both v7x TensorCores busy
    tn = min(_round_up(pl.cdiv(n8, steps), 8), block_n)
    n_pad = _round_up(max(int(n), 1), tn)
    return tn, n_pad


@functools.partial(jax.jit, static_argnames=("block_n", "min_steps"))
def critic_forward(state, action, prepped, *, block_n=2048, min_steps=2):
    """state: [N, S] f32, action: [N, A] f32 -> Q(s,a): [N, 1] f32."""
    n, state_dim = state.shape
    action_dim = action.shape[1]
    w1s, w1a, b1, w2, b2, w3, b3 = prepped

    block_n = _round_up(block_n, 8)
    tn, n_pad = _choose_tile(n, block_n, min_steps)
    grid = n_pad // tn
    if n_pad != n:
        state = jnp.pad(state, ((0, n_pad - n), (0, 0)))
        action = jnp.pad(action, ((0, n_pad - n), (0, 0)))
    state = state.astype(jnp.float32)
    action = action.astype(jnp.float32)

    # Weights/biases: full blocks, grid-invariant index_map -> Pallas keeps a
    # single resident copy in VMEM (no per-step re-DMA).
    full = lambda arr: pl.BlockSpec(arr.shape, lambda i: (0,) * arr.ndim)

    flops = 2 * n_pad * ((state_dim + action_dim) * H1P
                         + H1P * H2P + Q_ROWS * H2P)
    param_bytes = sum(int(x.size) * x.dtype.itemsize for x in prepped)
    bytes_accessed = (n_pad * (state_dim + action_dim) * 4
                      + n_pad * Q_ROWS * 4 + param_bytes)

    out = pl.pallas_call(
        critic_kernel,
        out_shape=jax.ShapeDtypeStruct((grid, Q_ROWS, tn), jnp.float32),
        grid_spec=pltpu.PrefetchScalarGridSpec(
            num_scalar_prefetch=0,
            grid=(grid,),
            in_specs=[
                pl.BlockSpec((tn, state_dim), lambda i: (i, 0)),
                pl.BlockSpec((tn, action_dim), lambda i: (i, 0)),
                full(w1s), full(w1a), full(b1),
                full(w2), full(b2), full(w3), full(b3),
            ],
            out_specs=pl.BlockSpec((1, Q_ROWS, tn), lambda i: (i, 0, 0)),
        ),
        compiler_params=pltpu.CompilerParams(
            dimension_semantics=("parallel",)),
        cost_estimate=pl.CostEstimate(
            flops=flops, transcendentals=0, bytes_accessed=bytes_accessed),
    )(state, action, w1s, w1a, b1, w2, b2, w3, b3)

    # Row 0 of each [8, tn] tile holds Q for that tile's batch rows.
    return out[:, 0, :].reshape(n_pad, 1)[:n]


def init_params(key, state_dim, action_dim):
    """Deterministic init matching nn.Linear default (U[-1/sqrt(fan_in), +])."""
    dims = [(state_dim + action_dim, H1), (H1, H2), (H2, 1)]
    params = []
    for fan_in, fan_out in dims:
        kw, kb, key = jax.random.split(key, 3)
        bound = 1.0 / jnp.sqrt(float(fan_in))
        w = jax.random.uniform(kw, (fan_in, fan_out), jnp.float32, -bound, bound)
        b = jax.random.uniform(kb, (1, fan_out), jnp.float32, -bound, bound)
        params += [w, b]
    return tuple(params)


def reference_forward(state, action, params):
    """Pure-f32 reference (exact PyTorch semantics)."""
    w1, b1, w2, b2, w3, b3 = params
    x = jnp.concatenate([state, action], axis=1)
    x = jnp.maximum(x @ w1 + b1, 0.0)
    x = jnp.maximum(x @ w2 + b2, 0.0)
    return x @ w3 + b3


def reference_forward_bf16(state, action, params):
    """Reference mirroring the kernel's bf16-operand / f32-acc / bf16-epilogue math."""
    w1, b1, w2, b2, w3, b3 = params
    x = jnp.concatenate([state, action], axis=1).astype(jnp.bfloat16)
    h1f = jnp.dot(x, w1.astype(jnp.bfloat16), preferred_element_type=jnp.float32)
    h1 = jnp.maximum(h1f.astype(jnp.bfloat16) + b1.astype(jnp.bfloat16), 0.0)
    h2f = jnp.dot(h1, w2.astype(jnp.bfloat16), preferred_element_type=jnp.float32)
    h2 = jnp.maximum(h2f.astype(jnp.bfloat16) + b2.astype(jnp.bfloat16), 0.0)
    q = jnp.dot(h2, w3.astype(jnp.bfloat16), preferred_element_type=jnp.float32)
    return q + b3


if __name__ == "__main__":
    state_dim, action_dim, batch = 16, 4, 8

    key = jax.random.PRNGKey(0)
    k_s, k_a, k_p = jax.random.split(key, 3)
    state = jax.random.normal(k_s, (batch, state_dim), jnp.float32)
    action = jax.random.normal(k_a, (batch, action_dim), jnp.float32)
    params = init_params(k_p, state_dim, action_dim)
    prepped = prepare_params(params, state_dim, action_dim)

    q = jax.block_until_ready(critic_forward(state, action, prepped))
    assert q.shape == (batch, 1)

    q_ref16 = reference_forward_bf16(state, action, params)
    q_ref32 = reference_forward(state, action, params)
    # Tight check vs. the bf16-mirroring reference (same math as the kernel).
    assert jnp.allclose(q, q_ref16, atol=5e-3, rtol=2e-2), (q, q_ref16)
    # Loose check vs. the exact f32 PyTorch-semantics reference.
    assert jnp.allclose(q, q_ref32, atol=5e-2, rtol=5e-2), (q, q_ref32)

    # Padded-batch path (N not a multiple of 8), single tile.
    s2 = jax.random.normal(jax.random.PRNGKey(1), (10, state_dim), jnp.float32)
    a2 = jax.random.normal(jax.random.PRNGKey(2), (10, action_dim), jnp.float32)
    q2 = jax.block_until_ready(critic_forward(s2, a2, prepped))
    assert q2.shape == (10, 1)
    assert jnp.allclose(q2, reference_forward_bf16(s2, a2, params),
                        atol=5e-3, rtol=2e-2)

    # Multi-tile path: grid > 1, tile width not a multiple of 128, lane-dense
    # output reassembly across tiles.
    s3 = jax.random.normal(jax.random.PRNGKey(3), (300, state_dim), jnp.float32)
    a3 = jax.random.normal(jax.random.PRNGKey(4), (300, action_dim), jnp.float32)
    q3 = jax.block_until_ready(critic_forward(s3, a3, prepped, block_n=128))
    assert q3.shape == (300, 1)
    assert jnp.allclose(q3, reference_forward_bf16(s3, a3, params),
                        atol=5e-3, rtol=2e-2)

    print("KERNEL_OK")
</pallas_src>

<mosaic_0001>
module attributes {stable_mosaic.version = 11 : i64} {
  func.func @critic_kernel(%arg0: i32, %arg1: memref<8x16xf32, #tpu.memory_space<vmem>>, %arg2: memref<8x4xf32, #tpu.memory_space<vmem>>, %arg3: memref<16x256xbf16, #tpu.memory_space<vmem>>, %arg4: memref<4x256xbf16, #tpu.memory_space<vmem>>, %arg5: memref<1x256xbf16, #tpu.memory_space<vmem>>, %arg6: memref<256x128xbf16, #tpu.memory_space<vmem>>, %arg7: memref<1x128xbf16, #tpu.memory_space<vmem>>, %arg8: memref<8x128xbf16, #tpu.memory_space<vmem>>, %arg9: memref<1x1xf32, #tpu.memory_space<vmem>>, %arg10: memref<1x8x8xf32, #tpu.memory_space<vmem>>) attributes {dimension_semantics = [#tpu.dimension_semantics<parallel>], iteration_bounds = array<i64: 1>, scalar_prefetch = 0 : i64, scratch_operands = 0 : i64, tpu.core_type = #tpu.core_type<tc>, window_params = [{transform_indices = @transform_0, window_bounds = array<i64: 8, 16>}, {transform_indices = @transform_1, window_bounds = array<i64: 8, 4>}, {pipeline_mode = #tpu.pipeline_mode<synchronous>, transform_indices = @transform_2, window_bounds = array<i64: 16, 256>}, {pipeline_mode = #tpu.pipeline_mode<synchronous>, transform_indices = @transform_3, window_bounds = array<i64: 4, 256>}, {pipeline_mode = #tpu.pipeline_mode<synchronous>, transform_indices = @transform_4, window_bounds = array<i64: 1, 256>}, {pipeline_mode = #tpu.pipeline_mode<synchronous>, transform_indices = @transform_5, window_bounds = array<i64: 256, 128>}, {pipeline_mode = #tpu.pipeline_mode<synchronous>, transform_indices = @transform_6, window_bounds = array<i64: 1, 128>}, {pipeline_mode = #tpu.pipeline_mode<synchronous>, transform_indices = @transform_7, window_bounds = array<i64: 8, 128>}, {pipeline_mode = #tpu.pipeline_mode<synchronous>, transform_indices = @transform_8, window_bounds = array<i64: 1, 1>}, {transform_indices = @transform_9, window_bounds = array<i64: 1, 8, 8>}]} {
    %c0 = arith.constant 0 : index
    %c0_0 = arith.constant 0 : index
    %0 = vector.load %arg1[%c0, %c0_0] : memref<8x16xf32, #tpu.memory_space<vmem>>, vector<8x16xf32>
    %1 = arith.truncf %0 : vector<8x16xf32> to vector<8x16xbf16>
    %c0_1 = arith.constant 0 : index
    %c0_2 = arith.constant 0 : index
    %2 = vector.load %arg2[%c0_1, %c0_2] : memref<8x4xf32, #tpu.memory_space<vmem>>, vector<8x4xf32>
    %3 = arith.truncf %2 : vector<8x4xf32> to vector<8x4xbf16>
    %c0_3 = arith.constant 0 : index
    %c0_4 = arith.constant 0 : index
    %4 = vector.load %arg3[%c0_3, %c0_4] : memref<16x256xbf16, #tpu.memory_space<vmem>>, vector<16x256xbf16>
    %cst = arith.constant dense<0.000000e+00> : vector<8x256xf32>
    %5 = tpu.matmul %1, %4, %cst {dimension_numbers = #tpu.dot_dimension_numbers<[1], [0], [0], [1], [0, 0, 1, 1], [], []>} : vector<8x16xbf16>, vector<16x256xbf16>, vector<8x256xf32> -> vector<8x256xf32>
    %c0_5 = arith.constant 0 : index
    %c0_6 = arith.constant 0 : index
    %6 = vector.load %arg4[%c0_5, %c0_6] : memref<4x256xbf16, #tpu.memory_space<vmem>>, vector<4x256xbf16>
    %cst_7 = arith.constant dense<0.000000e+00> : vector<8x256xf32>
    %7 = tpu.matmul %3, %6, %cst_7 {dimension_numbers = #tpu.dot_dimension_numbers<[1], [0], [0], [1], [0, 0, 1, 1], [], []>} : vector<8x4xbf16>, vector<4x256xbf16>, vector<8x256xf32> -> vector<8x256xf32>
    %8 = arith.addf %5, %7 : vector<8x256xf32>
    %9 = arith.truncf %8 : vector<8x256xf32> to vector<8x256xbf16>
    %c0_8 = arith.constant 0 : index
    %c0_9 = arith.constant 0 : index
    %10 = vector.load %arg5[%c0_8, %c0_9] : memref<1x256xbf16, #tpu.memory_space<vmem>>, vector<1x256xbf16>
    %11 = vector.broadcast %10 : vector<1x256xbf16> to vector<8x256xbf16>
    %12 = arith.addf %9, %11 : vector<8x256xbf16>
    %cst_10 = arith.constant 0.000000e+00 : bf16
    %13 = vector.broadcast %cst_10 : bf16 to vector<8x256xbf16>
    %14 = arith.maximumf %12, %13 : vector<8x256xbf16>
    %c0_11 = arith.constant 0 : index
    %c0_12 = arith.constant 0 : index
    %15 = vector.load %arg6[%c0_11, %c0_12] : memref<256x128xbf16, #tpu.memory_space<vmem>>, vector<256x128xbf16>
    %cst_13 = arith.constant dense<0.000000e+00> : vector<8x128xf32>
    %16 = tpu.matmul %14, %15, %cst_13 {dimension_numbers = #tpu.dot_dimension_numbers<[1], [0], [0], [1], [0, 0, 1, 1], [], []>} : vector<8x256xbf16>, vector<256x128xbf16>, vector<8x128xf32> -> vector<8x128xf32>
    %17 = arith.truncf %16 : vector<8x128xf32> to vector<8x128xbf16>
    %c0_14 = arith.constant 0 : index
    %c0_15 = arith.constant 0 : index
    %18 = vector.load %arg7[%c0_14, %c0_15] : memref<1x128xbf16, #tpu.memory_space<vmem>>, vector<1x128xbf16>
    %19 = vector.broadcast %18 : vector<1x128xbf16> to vector<8x128xbf16>
    %20 = arith.addf %17, %19 : vector<8x128xbf16>
    %cst_16 = arith.constant 0.000000e+00 : bf16
    %21 = vector.broadcast %cst_16 : bf16 to vector<8x128xbf16>
    %22 = arith.maximumf %20, %21 : vector<8x128xbf16>
    %c0_17 = arith.constant 0 : index
    %c0_18 = arith.constant 0 : index
    %23 = vector.load %arg8[%c0_17, %c0_18] : memref<8x128xbf16, #tpu.memory_space<vmem>>, vector<8x128xbf16>
    %cst_19 = arith.constant dense<0.000000e+00> : vector<8x8xf32>
    %24 = tpu.matmul %23, %22, %cst_19 {dimension_numbers = #tpu.dot_dimension_numbers<[1], [1], [0], [0], [0, 0, 1, 0], [], []>} : vector<8x128xbf16>, vector<8x128xbf16>, vector<8x8xf32> -> vector<8x8xf32>
    %c0_20 = arith.constant 0 : index
    %c0_21 = arith.constant 0 : index
    %25 = vector.load %arg9[%c0_20, %c0_21] : memref<1x1xf32, #tpu.memory_space<vmem>>, vector<1x1xf32>
    %26 = vector.broadcast %25 : vector<1x1xf32> to vector<8x8xf32>
    %27 = arith.addf %24, %26 : vector<8x8xf32>
    %c0_22 = arith.constant 0 : index
    %c0_23 = arith.constant 0 : index
    %c0_24 = arith.constant 0 : index
    %28 = vector.load %arg10[%c0_22, %c0_23, %c0_24] : memref<1x8x8xf32, #tpu.memory_space<vmem>>, vector<1x8x8xf32>
    %29 = vector.shape_cast %28 : vector<1x8x8xf32> to vector<8x8xf32>
    %30 = vector.shape_cast %27 : vector<8x8xf32> to vector<1x8x8xf32>
    tpu.vector_store %arg10[%c0_22, %c0_23, %c0_24], %30 {strides = array<i32>} : memref<1x8x8xf32, #tpu.memory_space<vmem>>, vector<1x8x8xf32>,
    return
  }
  func.func @transform_0(%arg0: i32) -> (i32, i32) {
    %c0_i32 = arith.constant 0 : i32
    %c0_i32_0 = arith.constant 0 : i32
    return %arg0, %c0_i32 : i32, i32
  }
  func.func @transform_1(%arg0: i32) -> (i32, i32) {
    %c0_i32 = arith.constant 0 : i32
    %c0_i32_0 = arith.constant 0 : i32
    return %arg0, %c0_i32 : i32, i32
  }
  func.func @transform_2(%arg0: i32) -> (i32, i32) {
    %c0_i32 = arith.constant 0 : i32
    %c0_i32_0 = arith.constant 0 : i32
    %c0_i32_1 = arith.constant 0 : i32
    return %c0_i32, %c0_i32_0 : i32, i32
  }
  func.func @transform_3(%arg0: i32) -> (i32, i32) {
    %c0_i32 = arith.constant 0 : i32
    %c0_i32_0 = arith.constant 0 : i32
    %c0_i32_1 = arith.constant 0 : i32
    return %c0_i32, %c0_i32_0 : i32, i32
  }
  func.func @transform_4(%arg0: i32) -> (i32, i32) {
    %c0_i32 = arith.constant 0 : i32
    %c0_i32_0 = arith.constant 0 : i32
    %c0_i32_1 = arith.constant 0 : i32
    return %c0_i32, %c0_i32_0 : i32, i32
  }
  func.func @transform_5(%arg0: i32) -> (i32, i32) {
    %c0_i32 = arith.constant 0 : i32
    %c0_i32_0 = arith.constant 0 : i32
    %c0_i32_1 = arith.constant 0 : i32
    return %c0_i32, %c0_i32_0 : i32, i32
  }
  func.func @transform_6(%arg0: i32) -> (i32, i32) {
    %c0_i32 = arith.constant 0 : i32
    %c0_i32_0 = arith.constant 0 : i32
    %c0_i32_1 = arith.constant 0 : i32
    return %c0_i32, %c0_i32_0 : i32, i32
  }
  func.func @transform_7(%arg0: i32) -> (i32, i32) {
    %c0_i32 = arith.constant 0 : i32
    %c0_i32_0 = arith.constant 0 : i32
    %c0_i32_1 = arith.constant 0 : i32
    return %c0_i32, %c0_i32_0 : i32, i32
  }
  func.func @transform_8(%arg0: i32) -> (i32, i32) {
    %c0_i32 = arith.constant 0 : i32
    %c0_i32_0 = arith.constant 0 : i32
    %c0_i32_1 = arith.constant 0 : i32
    return %c0_i32, %c0_i32_0 : i32, i32
  }
  func.func @transform_9(%arg0: i32) -> (i32, i32, i32) {
    %c0_i32 = arith.constant 0 : i32
    %c0_i32_0 = arith.constant 0 : i32
    %c0_i32_1 = arith.constant 0 : i32
    return %arg0, %c0_i32, %c0_i32_0 : i32, i32, i32
  }
}

</mosaic_0001>

<llo_original>
// kernel: critic_forward.1
$region0: #{critic_forward.1}
  #allocation0 [shape = 'u32[]', space=smem, size = 0x4, offset = 0x4, fixed_abs, tag = 'smem constant byte address 0x4 - core index']
  #allocation1 [shape = 'u32[144,128]{1,0:T(1,128)}', space=vmem, size = 0x12000, scoped, tag = 'internal scratch']
  #allocation2 [shape = 'f32[1,1]{1,0:T(1,128)S(1)}', space=vmem, size = 0x200, scoped, tag = 'scoped memory for critic_forward.1']
  %s0 = inlined_call_operand.hbm [shape: f32[8,16], index: 0, kind: input, shape index: {}]
  %s1 = inlined_call_operand.vmem [shape: f32[8,4], index: 1, kind: input, shape index: {}]
  %s2 = inlined_call_operand.vmem [shape: bf16[16,256], index: 2, kind: input, shape index: {}]
  %s3 = inlined_call_operand.vmem [shape: bf16[4,256], index: 3, kind: input, shape index: {}]
  %s4 = inlined_call_operand.vmem [shape: bf16[1,256], index: 4, kind: input, shape index: {}]
  %s5 = inlined_call_operand.hbm [shape: bf16[256,128], index: 5, kind: input, shape index: {}]
  %s6 = inlined_call_operand.vmem [shape: bf16[1,128], index: 6, kind: input, shape index: {}]
  %s7 = inlined_call_operand.vmem [shape: bf16[8,128], index: 7, kind: input, shape index: {}]
  %s8 = inlined_call_operand.<no memory space> [shape: f32[1,1], index: 8, kind: input, shape index: {}]
  %s9 = inlined_call_operand.vmem [shape: f32[1,8,8], index: 9, kind: output, shape index: {}]
  %s10 = sld [smem:[#allocation0]]
  $region54: #{critic_forward.1} parent=0
    _
  %s12 = ssub.s32 1, %s10
  %s13 = scalar_select 0, %s12, %s10
  %v14 = vstv %s8
  %15 = vst [vmem:[#allocation2] sm:$0x1] %v14
  $region1: #{critic_forward.1} parent=0
    #allocation3 [shape = 'u8[4096]{0}', space=vmem, size = 0x1000, scoped, tag = 'input window, operand 0, single buffered']
    #allocation4 [shape = 's32[1]{0}', space=sflag, size = 0x4, scoped, tag = 'scoped memory for critic_forward.1']
    #allocation5 [shape = 'u8[65536]{0}', space=vmem, size = 0x10000, scoped, tag = 'input window, operand 5, single buffered']
    #allocation6 [shape = 's32[1]{0}', space=sflag, size = 0x4, scoped, tag = 'scoped memory for critic_forward.1']
    %16 = vsyncpa [#allocation4], 0
    %17 = vsyncpa [#allocation6], 0
    // Predicated region
    $region2: #{critic_forward.1} parent=1 // pred_check
      _
    $region3: #{critic_forward.1} parent=1 // pred_check_branch
      %19 = sbr.rel (0) target = $region5
    $region4: #{critic_forward.1} parent=1 // pred_region
      %s21 = ssub.s32 128, 128
      %22 = vsyncadd [#allocation4], %s21
      %s24 = sshll.u32 [#allocation3], 4
      %s25 = int_to_ptr.vmem [resolvable:$true] %s24
      %27 = dma.hbm_to_vmem [thread:$0]  %s0, 128, %s25, [#allocation4]
    $region5: #{critic_forward.1} parent=1 // pred_fallthru
      _
    // Predicated region
    $region6: #{critic_forward.1} parent=1 // pred_check
      _
    $region7: #{critic_forward.1} parent=1 // pred_check_branch
      %29 = sbr.rel (0) target = $region9
    $region8: #{critic_forward.1} parent=1 // pred_region
      _
    $region9: #{critic_forward.1} parent=1 // pred_fallthru
      _
    // Predicated region
    $region10: #{critic_forward.1} parent=1 // pred_check
      _
    $region11: #{critic_forward.1} parent=1 // pred_check_branch
      %31 = sbr.rel (0) target = $region13
    $region12: #{critic_forward.1} parent=1 // pred_region
      _
    $region13: #{critic_forward.1} parent=1 // pred_fallthru
      _
    // Predicated region
    $region14: #{critic_forward.1} parent=1 // pred_check
      _
    $region15: #{critic_forward.1} parent=1 // pred_check_branch
      %33 = sbr.rel (0) target = $region17
    $region16: #{critic_forward.1} parent=1 // pred_region
      _
    $region17: #{critic_forward.1} parent=1 // pred_fallthru
      _
    // Predicated region
    $region18: #{critic_forward.1} parent=1 // pred_check
      _
    $region19: #{critic_forward.1} parent=1 // pred_check_branch
      %35 = sbr.rel (0) target = $region21
    $region20: #{critic_forward.1} parent=1 // pred_region
      _
    $region21: #{critic_forward.1} parent=1 // pred_fallthru
      _
    // Predicated region
    $region22: #{critic_forward.1} parent=1 // pred_check
      _
    $region23: #{critic_forward.1} parent=1 // pred_check_branch
      %37 = sbr.rel (0) target = $region25
    $region24: #{critic_forward.1} parent=1 // pred_region
      %s39 = ssub.s32 2048, 2048
      %40 = vsyncadd [#allocation6], %s39
      %s41 = sshll.u32 [#allocation5], 4
      %s42 = int_to_ptr.vmem [resolvable:$true] %s41
      %47 = dma.hbm_to_vmem [thread:$0]  %s5, 2048, %s42, [#allocation6], 64, 64, 4
    $region25: #{critic_forward.1} parent=1 // pred_fallthru
      _
    // Predicated region
    $region26: #{critic_forward.1} parent=1 // pred_check
      _
    $region27: #{critic_forward.1} parent=1 // pred_check_branch
      %49 = sbr.rel (0) target = $region29
    $region28: #{critic_forward.1} parent=1 // pred_region
      _
    $region29: #{critic_forward.1} parent=1 // pred_fallthru
      _
    // Predicated region
    $region30: #{critic_forward.1} parent=1 // pred_check
      _
    $region31: #{critic_forward.1} parent=1 // pred_check_branch
      %51 = sbr.rel (0) target = $region33
    $region32: #{critic_forward.1} parent=1 // pred_region
      _
    $region33: #{critic_forward.1} parent=1 // pred_fallthru
      _
    // Predicated region
    $region34: #{critic_forward.1} parent=1 // pred_check
      _
    $region35: #{critic_forward.1} parent=1 // pred_check_branch
      %53 = sbr.rel (0) target = $region37
    $region36: #{critic_forward.1} parent=1 // pred_region
      _
    $region37: #{critic_forward.1} parent=1 // pred_fallthru
      _
    // Predicated region
    $region38: #{critic_forward.1} parent=1 // pred_check
      _
    $region39: #{critic_forward.1} parent=1 // pred_check_branch
      %55 = sbr.rel (0) target = $region41
    $region40: #{critic_forward.1} parent=1 // pred_region
      %56 = dma.done [#allocation4], 128
    $region41: #{critic_forward.1} parent=1 // pred_fallthru
      _
    // Predicated region
    $region42: #{critic_forward.1} parent=1 // pred_check
      _
    $region43: #{critic_forward.1} parent=1 // pred_check_branch
      %58 = sbr.rel (0) target = $region45
    $region44: #{critic_forward.1} parent=1 // pred_region
      %59 = dma.done [#allocation6], 2048
    $region45: #{critic_forward.1} parent=1 // pred_fallthru
      _
    %v61 = vld [vmem:[#allocation3] sm:$0xff]
    %v62 = vpack.c.bf16 %v61, %v61
    %v63 = vld [vmem:[%s1] sm:$0xff]
    %v64 = vpack.c.bf16 %v63, %v63
    %v65 = vld [vmem:[%s2] sm:$0xff]
    %v66 = vld [vmem:[%s2 + $0x8] sm:$0xff]
    %v67 = vld [vmem:[%s3] sm:$0xf]
    %v70 = vunpack.c.l.s4 1983009808
    %v71 = vunpack.c.0.s8 %v70
    %v72 = vlaneseq
    %v73 = vshrl.u32 %v72, 7
    %v74 = vsub.s32 %v71, %v73
    %v75 = vrot.slane %v67, %v74
    %v76 = vcombine.high %v75, %v75
    %vm77 = vcmask 31744
    %v79 = vsel %vm77, %v64, 0
    %vm81 = vcmask 1041408
    %v83 = vsel %vm81, %v75, 0
    %v86 = vsel %vm81, %v76, 0
    %88 = vmatprep.subr.bf16.mxu0 %v86
    %89 = vmatpush1.bf16.msra.mxu0 %v83
    %90 = vmatprep.subr.bf16.mxu0 0
    %91 = vmatpush1.bf16.msra.mxu0 0
    %92 = vmatprep.subr.bf16.mxu0 0
    %93 = vmatpush1.bf16.msra.mxu0 0
    %94 = vmatprep.subr.bf16.mxu0 0
    %95 = vmatpush1.bf16.msra.mxu0 0
    %96 = vmatprep.subr.bf16.mxu0 0
    %97 = vmatpush1.bf16.msra.mxu0 0
    %98 = vmatprep.subr.bf16.mxu0 0
    %99 = vmatpush1.bf16.msra.mxu0 0
    %100 = vmatprep.subr.bf16.mxu0 0
    %101 = vmatpush1.bf16.msra.mxu0 0
    %102 = vmatprep.subr.bf16.mxu0 0
    %103 = vmatpush1.bf16.msra.mxu0 0
    %104 = vmatprep.subr.bf16.mxu0 0
    %105 = vmatpush1.bf16.msra.mxu0 0
    %106 = vmatprep.subr.bf16.mxu0 0
    %107 = vmatpush1.bf16.msra.mxu0 0
    %108 = vmatprep.subr.bf16.mxu0 0
    %109 = vmatpush1.bf16.msra.mxu0 0
    %110 = vmatprep.subr.bf16.mxu0 0
    %111 = vmatpush1.bf16.msra.mxu0 0
    %112 = vmatprep.subr.bf16.mxu0 0
    %113 = vmatpush1.bf16.msra.mxu0 0
    %114 = vmatprep.subr.bf16.mxu0 0
    %115 = vmatpush1.bf16.msra.mxu0 0
    %116 = vmatprep.subr.bf16.mxu0 0
    %117 = vmatpush1.bf16.msra.mxu0 0
    %118 = vmatprep.subr.bf16.mxu0 0
    %119 = vmatpush1.bf16.msra.mxu0 0
    %120 = vmatprep.mubr.bf16.mxu0 0
    %121 = vmatmul.mubr.bf16.gmra.mrb[0].mxu0 %v79
    %v122 = vpop.f32.mrb[0].mxu0
    %v123 = vadd.f32 0.0, %v122
    %v124 = vpop.f32.mrb[0].mxu0
    %v125 = vadd.f32 0.0, %v124
    %v126 = vpop.f32.mrb[0].mxu0
    %v127 = vpop.f32.mrb[0].mxu0
    %128 = vdwg.mxu0
    %v131 = vunpack.c.l.b16 %v65
    %v132 = vunpack.c.h.b16 %v65
    %v133 = vunpack.c.l.b16 %v66
    %v134 = vunpack.c.h.b16 %v66
    %v135 = vpack.c.b16 %v133, %v131
    %v136 = vpack.c.b16 %v134, %v132
    %vm139 = vcmask 130048
    %v141 = vsel %vm139, %v62, 0
    %143 = vmatprep.subr.bf16.mxu0 %v136
    %144 = vmatpush1.bf16.msra.mxu0 %v135
    %145 = vmatprep.subr.bf16.mxu0 0
    %146 = vmatpush1.bf16.msra.mxu0 0
    %147 = vmatprep.subr.bf16.mxu0 0
    %148 = vmatpush1.bf16.msra.mxu0 0
    %149 = vmatprep.subr.bf16.mxu0 0
    %150 = vmatpush1.bf16.msra.mxu0 0
    %151 = vmatprep.subr.bf16.mxu0 0
    %152 = vmatpush1.bf16.msra.mxu0 0
    %153 = vmatprep.subr.bf16.mxu0 0
    %154 = vmatpush1.bf16.msra.mxu0 0
    %155 = vmatprep.subr.bf16.mxu0 0
    %156 = vmatpush1.bf16.msra.mxu0 0
    %157 = vmatprep.subr.bf16.mxu0 0
    %158 = vmatpush1.bf16.msra.mxu0 0
    %159 = vmatprep.subr.bf16.mxu0 0
    %160 = vmatpush1.bf16.msra.mxu0 0
    %161 = vmatprep.subr.bf16.mxu0 0
    %162 = vmatpush1.bf16.msra.mxu0 0
    %163 = vmatprep.subr.bf16.mxu0 0
    %164 = vmatpush1.bf16.msra.mxu0 0
    %165 = vmatprep.subr.bf16.mxu0 0
    %166 = vmatpush1.bf16.msra.mxu0 0
    %167 = vmatprep.subr.bf16.mxu0 0
    %168 = vmatpush1.bf16.msra.mxu0 0
    %169 = vmatprep.subr.bf16.mxu0 0
    %170 = vmatpush1.bf16.msra.mxu0 0
    %171 = vmatprep.subr.bf16.mxu0 0
    %172 = vmatpush1.bf16.msra.mxu0 0
    %173 = vmatprep.subr.bf16.mxu0 0
    %174 = vmatpush1.bf16.msra.mxu0 0
    %175 = vmatprep.mubr.bf16.mxu0 0
    %176 = vmatmul.mubr.bf16.gmra.mrb[0].mxu0 %v141
    %v177 = vpop.f32.mrb[0].mxu0
    %v178 = vadd.f32 %v123, %v177
    %v179 = vpop.f32.mrb[0].mxu0
    %v180 = vadd.f32 %v125, %v179
    %v181 = vpop.f32.mrb[0].mxu0
    %v182 = vpop.f32.mrb[0].mxu0
    %183 = vdwg.mxu0
    %v184 = vpack.c.bf16 %v178, %v178
    %v185 = vpack.c.bf16 %v180, %v180
    %v186 = vld [vmem:[%s4] sm:$0x3]
    %v189 = vunpack.c.l.s4 1966171168
    %v190 = vunpack.c.0.s8 %v189
    %v191 = vlaneseq
    %v192 = vshrl.u32 %v191, 7
    %v193 = vsub.s32 %v190, %v192
    %v194 = vrot.slane %v186, %v193
    %v195 = vcombine.high %v194, %v194
    %v197 = vunpack.c.l.s4 1966171168
    %v198 = vunpack.c.0.s8 %v197
    %v199 = vlaneseq
    %v200 = vshrl.u32 %v199, 7
    %v201 = vsub.s32 %v198, %v200
    %v202 = vrot.slane %v194, %v201
    %v204 = vunpack.c.l.s4 1966171168
    %v205 = vunpack.c.0.s8 %v204
    %v206 = vlaneseq
    %v207 = vshrl.u32 %v206, 7
    %v208 = vsub.s32 %v205, %v207
    %v209 = vrot.slane %v195, %v208
    %v211 = vpack.i.b16 %v202, %v202
    %v213 = vlaneseq
    %v214 = vshrl.u32 %v213, 7
    %v215 = vsub.s32 0, %v214
    %v216 = vrot.slane %v211, %v215
    %v218 = vpack.i.b16 %v209, %v209
    %v220 = vlaneseq
    %v221 = vshrl.u32 %v220, 7
    %v222 = vsub.s32 0, %v221
    %v223 = vrot.slane %v218, %v222
    %v224 = vadd.bf16 %v184, %v216
    %v225 = vadd.bf16 %v185, %v223
    %v226 = vmax.bf16 %v224, 0
    %v227 = vmax.bf16 %v225, 0
    %v228 = vld [vmem:[#allocation5] sm:$0xf]
    %v229 = vld [vmem:[#allocation5 + $0x4] sm:$0xf]
    %v230 = vld [vmem:[#allocation5 + $0x8] sm:$0xf]
    %v231 = vld [vmem:[#allocation5 + $0xc] sm:$0xf]
    %v232 = vld [vmem:[#allocation5 + $0x10] sm:$0xf]
    %v233 = vld [vmem:[#allocation5 + $0x14] sm:$0xf]
    %v234 = vld [vmem:[#allocation5 + $0x18] sm:$0xf]
    %v235 = vld [vmem:[#allocation5 + $0x1c] sm:$0xf]
    %v236 = vld [vmem:[#allocation5 + $0x20] sm:$0xf]
    %v237 = vld [vmem:[#allocation5 + $0x24] sm:$0xf]
    %v238 = vld [vmem:[#allocation5 + $0x28] sm:$0xf]
    %v239 = vld [vmem:[#allocation5 + $0x2c] sm:$0xf]
    %v240 = vld [vmem:[#allocation5 + $0x30] sm:$0xf]
    %v241 = vld [vmem:[#allocation5 + $0x34] sm:$0xf]
    %v242 = vld [vmem:[#allocation5 + $0x38] sm:$0xf]
    %v243 = vld [vmem:[#allocation5 + $0x3c] sm:$0xf]
    %v244 = vld [vmem:[#allocation5 + $0x40] sm:$0xf]
    %v245 = vld [vmem:[#allocation5 + $0x44] sm:$0xf]
    %v246 = vld [vmem:[#allocation5 + $0x48] sm:$0xf]
    %v247 = vld [vmem:[#allocation5 + $0x4c] sm:$0xf]
    %v248 = vld [vmem:[#allocation5 + $0x50] sm:$0xf]
    %v249 = vld [vmem:[#allocation5 + $0x54] sm:$0xf]
    %v250 = vld [vmem:[#allocation5 + $0x58] sm:$0xf]
    %v251 = vld [vmem:[#allocation5 + $0x5c] sm:$0xf]
    %v252 = vld [vmem:[#allocation5 + $0x60] sm:$0xf]
    %v253 = vld [vmem:[#allocation5 + $0x64] sm:$0xf]
    %v254 = vld [vmem:[#allocation5 + $0x68] sm:$0xf]
    %v255 = vld [vmem:[#allocation5 + $0x6c] sm:$0xf]
    %v256 = vld [vmem:[#allocation5 + $0x70] sm:$0xf]
    %v257 = vld [vmem:[#allocation5 + $0x74] sm:$0xf]
    %v258 = vld [vmem:[#allocation5 + $0x78] sm:$0xf]
    %v259 = vld [vmem:[#allocation5 + $0x7c] sm:$0xf]
    %v292 = vunpack.c.l.b16 %v228
    %v293 = vunpack.c.l.b16 %v229
    %v294 = vunpack.c.l.b16 %v230
    %v295 = vunpack.c.l.b16 %v231
    %v296 = vunpack.c.l.b16 %v232
    %v297 = vunpack.c.l.b16 %v233
    %v298 = vunpack.c.l.b16 %v234
    %v299 = vunpack.c.l.b16 %v235
    %v300 = vunpack.c.l.b16 %v236
    %v301 = vunpack.c.l.b16 %v237
    %v302 = vunpack.c.l.b16 %v238
    %v303 = vunpack.c.l.b16 %v239
    %v304 = vunpack.c.l.b16 %v240
    %v305 = vunpack.c.l.b16 %v241
    %v306 = vunpack.c.l.b16 %v242
    %v307 = vunpack.c.l.b16 %v243
    %v308 = vunpack.c.l.b16 %v244
    %v309 = vunpack.c.l.b16 %v245
    %v310 = vunpack.c.l.b16 %v246
    %v311 = vunpack.c.l.b16 %v247
    %v312 = vunpack.c.l.b16 %v248
    %v313 = vunpack.c.l.b16 %v249
    %v314 = vunpack.c.l.b16 %v250
    %v315 = vunpack.c.l.b16 %v251
    %v316 = vunpack.c.l.b16 %v252
    %v317 = vunpack.c.l.b16 %v253
    %v318 = vunpack.c.l.b16 %v254
    %v319 = vunpack.c.l.b16 %v255
    %v320 = vunpack.c.l.b16 %v256
    %v321 = vunpack.c.l.b16 %v257
    %v322 = vunpack.c.l.b16 %v258
    %v323 = vunpack.c.l.b16 %v259
    %v324 = vpack.c.b16 %v293, %v292
    %v325 = vpack.c.b16 %v295, %v294
    %v326 = vpack.c.b16 %v297, %v296
    %v327 = vpack.c.b16 %v299, %v298
    %v328 = vpack.c.b16 %v301, %v300
    %v329 = vpack.c.b16 %v303, %v302
    %v330 = vpack.c.b16 %v305, %v304
    %v331 = vpack.c.b16 %v307, %v306
    %v332 = vpack.c.b16 %v309, %v308
    %v333 = vpack.c.b16 %v311, %v310
    %v334 = vpack.c.b16 %v313, %v312
    %v335 = vpack.c.b16 %v315, %v314
    %v336 = vpack.c.b16 %v317, %v316
    %v337 = vpack.c.b16 %v319, %v318
    %v338 = vpack.c.b16 %v321, %v320
    %v339 = vpack.c.b16 %v323, %v322
    %356 = vmatprep.subr.bf16.mxu0 0
    %357 = vmatpush1.bf16.msra.mxu0 %v324
    %358 = vmatprep.subr.bf16.mxu0 0
    %359 = vmatpush1.bf16.msra.mxu0 %v325
    %360 = vmatprep.subr.bf16.mxu0 0
    %361 = vmatpush1.bf16.msra.mxu0 %v326
    %362 = vmatprep.subr.bf16.mxu0 0
    %363 = vmatpush1.bf16.msra.mxu0 %v327
    %364 = vmatprep.subr.bf16.mxu0 0
    %365 = vmatpush1.bf16.msra.mxu0 %v328
    %366 = vmatprep.subr.bf16.mxu0 0
    %367 = vmatpush1.bf16.msra.mxu0 %v329
    %368 = vmatprep.subr.bf16.mxu0 0
    %369 = vmatpush1.bf16.msra.mxu0 %v330
    %370 = vmatprep.subr.bf16.mxu0 0
    %371 = vmatpush1.bf16.msra.mxu0 %v331
    %372 = vmatprep.subr.bf16.mxu0 0
    %373 = vmatpush1.bf16.msra.mxu0 %v332
    %374 = vmatprep.subr.bf16.mxu0 0
    %375 = vmatpush1.bf16.msra.mxu0 %v333
    %376 = vmatprep.subr.bf16.mxu0 0
    %377 = vmatpush1.bf16.msra.mxu0 %v334
    %378 = vmatprep.subr.bf16.mxu0 0
    %379 = vmatpush1.bf16.msra.mxu0 %v335
    %380 = vmatprep.subr.bf16.mxu0 0
    %381 = vmatpush1.bf16.msra.mxu0 %v336
    %382 = vmatprep.subr.bf16.mxu0 0
    %383 = vmatpush1.bf16.msra.mxu0 %v337
    %384 = vmatprep.subr.bf16.mxu0 0
    %385 = vmatpush1.bf16.msra.mxu0 %v338
    %386 = vmatprep.subr.bf16.mxu0 0
    %387 = vmatpush1.bf16.msra.mxu0 %v339
    %388 = vmatprep.mubr.bf16.mxu0 %v227
    %389 = vmatmul.mubr.bf16.gmra.mrb[0].mxu0 %v226
    %v390 = vpop.f32.mrb[0].mxu0
    %v391 = vadd.f32 0.0, %v390
    %v392 = vpop.f32.mrb[0].mxu0
    %v393 = vpop.f32.mrb[0].mxu0
    %v394 = vpop.f32.mrb[0].mxu0
    %395 = vdwg.mxu0
    %v396 = vpack.c.bf16 %v391, %v391
    %v397 = vld [vmem:[%s6] sm:$0x1]
    %v399 = vpack.i.b16 %v397, %v397
    %v401 = vlaneseq
    %v402 = vshrl.u32 %v401, 7
    %v403 = vsub.s32 0, %v402
    %v404 = vrot.slane %v399, %v403
    %v405 = vadd.bf16 %v396, %v404
    %v406 = vmax.bf16 %v405, 0
    %v407 = vld [vmem:[%s7] sm:$0xf]
    %v408 = vld [vmem:[#allocation2] sm:$0x1]
    %v410 = vlaneseq
    %v411 = vshrl.u32 %v410, 7
    %v412 = vsub.s32 0, %v411
    %v413 = vrot.slane %v408, %v412
    %414 = vset.pattern.permute.xlu0 0
    %415 = vperm.xlu0 %414, %v413
    %v416 = vpop.permute.xlu0 %415
    %418 = vmatprep.subr.bf16.mxu0 0
    %419 = vmatpush1.bf16.xpose.msra.mxu0 %v406
    %420 = vmatprep.subr.bf16.mxu0 0
    %421 = vmatpush1.bf16.xpose.msra.mxu0 0
    %422 = vmatprep.subr.bf16.mxu0 0
    %423 = vmatpush1.bf16.xpose.msra.mxu0 0
    %424 = vmatprep.subr.bf16.mxu0 0
    %425 = vmatpush1.bf16.xpose.msra.mxu0 0
    %426 = vmatprep.subr.bf16.mxu0 0
    %427 = vmatpush1.bf16.xpose.msra.mxu0 0
    %428 = vmatprep.subr.bf16.mxu0 0
    %429 = vmatpush1.bf16.xpose.msra.mxu0 0
    %430 = vmatprep.subr.bf16.mxu0 0
    %431 = vmatpush1.bf16.xpose.msra.mxu0 0
    %432 = vmatprep.subr.bf16.mxu0 0
    %433 = vmatpush1.bf16.xpose.msra.mxu0 0
    %434 = vmatprep.subr.bf16.mxu0 0
    %435 = vmatpush1.bf16.xpose.msra.mxu0 0
    %436 = vmatprep.subr.bf16.mxu0 0
    %437 = vmatpush1.bf16.xpose.msra.mxu0 0
    %438 = vmatprep.subr.bf16.mxu0 0
    %439 = vmatpush1.bf16.xpose.msra.mxu0 0
    %440 = vmatprep.subr.bf16.mxu0 0
    %441 = vmatpush1.bf16.xpose.msra.mxu0 0
    %442 = vmatprep.subr.bf16.mxu0 0
    %443 = vmatpush1.bf16.xpose.msra.mxu0 0
    %444 = vmatprep.subr.bf16.mxu0 0
    %445 = vmatpush1.bf16.xpose.msra.mxu0 0
    %446 = vmatprep.subr.bf16.mxu0 0
    %447 = vmatpush1.bf16.xpose.msra.mxu0 0
    %448 = vmatprep.subr.bf16.mxu0 0
    %449 = vmatpush1.bf16.xpose.msra.mxu0 0
    %450 = vmatprep.mubr.bf16.mxu0 0
    %451 = vmatmul.mubr.bf16.gmra.mrb[0].mxu0 %v407
    %v452 = vpop.f32.mrb[0].mxu0
    %v453 = vadd.f32 %v416, %v452
    %v454 = vpop.f32.mrb[0].mxu0
    %v455 = vpop.f32.mrb[0].mxu0
    %v456 = vpop.f32.mrb[0].mxu0
    %457 = vdwg.mxu0
    %vm458 = vcmask 64512
    %459 = vst.msk [vmem:[%s9] sm:$0xff] %vm458, %v453
    // Predicated region
    $region46: #{critic_forward.1} parent=1 // pred_check
      _
    $region47: #{critic_forward.1} parent=1 // pred_check_branch
      %461 = sbr.rel (0) target = $region49
    $region48: #{critic_forward.1} parent=1 // pred_region
      _
    $region49: #{critic_forward.1} parent=1 // pred_fallthru
      _
    // Predicated region
    $region50: #{critic_forward.1} parent=1 // pred_check
      _
    $region51: #{critic_forward.1} parent=1 // pred_check_branch
      %463 = sbr.rel (0) target = $region53
    $region52: #{critic_forward.1} parent=1 // pred_region
      _
    $region53: #{critic_forward.1} parent=1 // pred_fallthru
      _
    %464 = vsyncpa [#allocation4], 1
    %465 = vsyncpa [#allocation6], 1

</llo_original>
